<compile_context>
chip_gen: v7x
topology: tpu7x:2x2x1
jax: 0.10.0
libtpu: 0.0.40
codegen_flags: <defaults>
</compile_context>

<pallas_src>
import functools

import jax
import jax.numpy as jnp
from jax import lax
from jax.experimental import pallas as pl
from jax.experimental.pallas import tpu as pltpu


def _ce_partials_kernel(score_ref, target_ref, out_ref, *,
                        ignore_label, rows, tile_rows, ragged):
    """One grid step.

    score_ref : (1, C, Ts, 128) logits block (native dtype, pixels packed
                dense across sublanes+lanes)
    target_ref: (1, 1, Ts, 128) int32 labels block
    out_ref   : (1, 1, C, 2) f32 -> [:, 0] per-class sum of nll,
                                    [:, 1] per-class valid-pixel count
    """
    x = score_ref[0].astype(jnp.float32)     # (C, Ts, 128) — f32 math in-kernel
    y = target_ref[0, 0]                     # (Ts, 128) int32
    C = x.shape[0]

    # Numerically stable logsumexp over the (small, leading) class axis.
    # With the repacked layout these are elementwise ops over dense slabs.
    m = jnp.max(x, axis=0)                                        # (Ts, 128)
    lse = m + jnp.log(jnp.sum(jnp.exp(x - m[None]), axis=0))      # (Ts, 128)

    # Validity: not ignored; the ragged-row check is compiled in only when the
    # row-tiling is inexact, and costs a local iota + compare on the (small)
    # label slab only (no absolute-pixel arithmetic per logit element).
    valid = y != ignore_label                                     # (Ts, 128)
    if ragged:
        row = lax.broadcasted_iota(jnp.int32, y.shape, 0)
        limit = rows - pl.program_id(1) * tile_rows               # scalar
        valid = valid & (row < limit)

    # One-hot of the label along the class axis; exactly one True per valid
    # pixel.  Keep jnp.where (NOT arithmetic masking): out-of-range rows of a
    # ragged block may hold garbage logits whose lse is NaN/Inf.
    cls = lax.broadcasted_iota(jnp.int32, x.shape, 0)             # (C, Ts, 128)
    sel = (cls == y[None]) & valid[None]                          # (C, Ts, 128)
    nll = lse[None] - x                                           # (C, Ts, 128)

    # Reduce rows first (VALU adds across vregs), lanes last (tiny XLU work).
    num_r = jnp.sum(jnp.where(sel, nll, 0.0), axis=1)             # (C, 128)
    cnt_r = jnp.sum(sel.astype(jnp.float32), axis=1)              # (C, 128)
    num_c = jnp.sum(num_r, axis=-1, keepdims=True)                # (C, 1)
    cnt_c = jnp.sum(cnt_r, axis=-1, keepdims=True)                # (C, 1)
    out_ref[0, 0] = jnp.concatenate([num_c, cnt_c], axis=-1)      # (C, 2)


def cross_entropy_loss(score, target, weight=None, ignore_label=-1,
                       tile_pixels=131072, resize_dtype=None):
    """score: (N, C, H, W) float (any float dtype), target: (N, h, w) int
    -> scalar f32 loss.  `resize_dtype=jnp.bfloat16` halves HBM traffic on
    the resize branch (in-kernel math stays f32)."""
    N, C, ph, pw = score.shape
    _, h, w = target.shape
    if (ph, pw) != (h, w):
        # antialias=False to match F.interpolate(mode='bilinear',
        # align_corners=False) exactly even if this ever downsamples.
        score = jax.image.resize(score, (N, C, h, w), method="bilinear",
                                 antialias=False)
        if resize_dtype is not None:
            score = score.astype(resize_dtype)   # fuses into the resize output

    hw = h * w
    hw_pad = ((hw + 127) // 128) * 128
    logits = score.reshape(N, C, hw)                     # free reshape, native dtype
    labels = target.reshape(N, hw).astype(jnp.int32)
    if hw_pad != hw:
        # Rare path (hw not a multiple of 128): pad labels with ignore_label
        # (padded pixels contribute nothing) and logits with zeros (no NaNs).
        logits = jnp.pad(logits, ((0, 0), (0, 0), (0, hw_pad - hw)))
        labels = jnp.pad(labels, ((0, 0), (0, hw_pad - hw)),
                         constant_values=ignore_label)

    rows = hw_pad // 128
    logits = logits.reshape(N, C, rows, 128)             # pixels dense on sublanes+lanes
    labels = labels.reshape(N, 1, rows, 128)

    tile_rows = max(8, (tile_pixels // 128) // 8 * 8)    # 8-aligned row tile
    if rows <= tile_rows:
        ts, n_rt, ragged = rows, 1, False                # full-dim block, no mask
    else:
        ts = tile_rows
        n_rt = pl.cdiv(rows, ts)
        ragged = (rows % ts) != 0                        # mask compiled in only if needed

    part = pl.pallas_call(
        functools.partial(_ce_partials_kernel, ignore_label=ignore_label,
                          rows=rows, tile_rows=ts, ragged=ragged),
        out_shape=jax.ShapeDtypeStruct((N, n_rt, C, 2), jnp.float32),
        grid=(N, n_rt),
        in_specs=[
            pl.BlockSpec((1, C, ts, 128), lambda n, t: (n, 0, t, 0)),
            pl.BlockSpec((1, 1, ts, 128), lambda n, t: (n, 0, t, 0)),
        ],
        out_specs=pl.BlockSpec((1, 1, C, 2), lambda n, t: (n, t, 0, 0)),
        compiler_params=pltpu.CompilerParams(
            dimension_semantics=("parallel", "parallel")),
    )(logits, labels)

    # Tiny epilogue in plain JAX: class weights, global reduce, divide.
    if weight is None:
        wvec = jnp.ones((C,), jnp.float32)
    else:
        wvec = jnp.asarray(weight, jnp.float32)
    num = jnp.sum(part[..., 0] * wvec)
    den = jnp.sum(part[..., 1] * wvec)
    return num / den      # NaN if every pixel is ignored, same as PyTorch


class CrossEntropy:
    """JAX/Pallas port of TruFor's CrossEntropy module (forward only)."""

    def __init__(self, ignore_label=-1, weight=None, resize_dtype=None):
        self.ignore_label = ignore_label
        self.weight = weight
        self.resize_dtype = resize_dtype

    def __call__(self, score, target):
        return cross_entropy_loss(score, target, weight=self.weight,
                                  ignore_label=self.ignore_label,
                                  resize_dtype=self.resize_dtype)


def _reference_loss(score, target, weight, ignore_label):
    """Pure-JAX reference matching nn.CrossEntropyLoss semantics."""
    N, C, ph, pw = score.shape
    _, h, w = target.shape
    if (ph, pw) != (h, w):
        score = jax.image.resize(score, (N, C, h, w), method="bilinear",
                                 antialias=False)
    logits = jnp.transpose(score, (0, 2, 3, 1)).reshape(-1, C).astype(jnp.float32)
    labels = target.reshape(-1)
    logp = jax.nn.log_softmax(logits, axis=-1)
    safe = jnp.where(labels == ignore_label, 0, labels)
    nll = -jnp.take_along_axis(logp, safe[:, None], axis=-1)[:, 0]
    w_y = jnp.asarray(weight, jnp.float32)[safe]
    valid = labels != ignore_label
    num = jnp.sum(jnp.where(valid, nll * w_y, 0.0))
    den = jnp.sum(jnp.where(valid, w_y, 0.0))
    return num / den


if __name__ == "__main__":
    key = jax.random.PRNGKey(0)
    k1, k2, k3 = jax.random.split(key, 3)

    N, C = 2, 4
    weight = jnp.array([1.0, 2.0, 0.5, 1.5], jnp.float32)
    crit = CrossEntropy(ignore_label=-1, weight=weight)

    # Case 1: score needs bilinear upsampling to the target resolution.
    score1 = jax.random.normal(k1, (N, C, 8, 8), dtype=jnp.float32)
    target = jax.random.randint(k2, (N, 16, 16), -1, C, dtype=jnp.int32)
    loss1 = jax.block_until_ready(crit(score1, target))
    ref1 = _reference_loss(score1, target, weight, -1)
    assert jnp.allclose(loss1, ref1, rtol=1e-5, atol=1e-5), (loss1, ref1)

    # Case 2: score already at target resolution (no resize path).
    score2 = jax.random.normal(k3, (N, C, 16, 16), dtype=jnp.float32)
    loss2 = jax.block_until_ready(crit(score2, target))
    ref2 = _reference_loss(score2, target, weight, -1)
    assert jnp.allclose(loss2, ref2, rtol=1e-5, atol=1e-5), (loss2, ref2)

    # Case 3: bf16 resize intermediate (halves resize-branch HBM traffic).
    loss3 = jax.block_until_ready(
        cross_entropy_loss(score1, target, weight=weight, ignore_label=-1,
                           resize_dtype=jnp.bfloat16))
    assert jnp.allclose(loss3, ref1, rtol=2e-2, atol=2e-2), (loss3, ref1)

    # Case 4: native bf16 logits (bf16 DMA, f32 math in-kernel).
    loss4 = jax.block_until_ready(
        cross_entropy_loss(score2.astype(jnp.bfloat16), target, weight=weight,
                           ignore_label=-1))
    assert jnp.allclose(loss4, ref2, rtol=2e-2, atol=2e-2), (loss4, ref2)

    print("KERNEL_OK")
</pallas_src>

<mosaic_0001>
module attributes {stable_mosaic.version = 11 : i64} {
  func.func @_ce_partials_kernel(%arg0: i32, %arg1: i32, %arg2: memref<1x4x2x128xf32, #tpu.memory_space<vmem>>, %arg3: memref<1x1x2x128xi32, #tpu.memory_space<vmem>>, %arg4: memref<1x1x4x2xf32, #tpu.memory_space<vmem>>) attributes {dimension_semantics = [#tpu.dimension_semantics<parallel>, #tpu.dimension_semantics<parallel>], iteration_bounds = array<i64: 2, 1>, scalar_prefetch = 0 : i64, scratch_operands = 0 : i64, tpu.core_type = #tpu.core_type<tc>, window_params = [{transform_indices = @transform_0, window_bounds = array<i64: 1, 4, 2, 128>}, {transform_indices = @transform_1, window_bounds = array<i64: 1, 1, 2, 128>}, {transform_indices = @transform_2, window_bounds = array<i64: 1, 1, 4, 2>}]} {
    %c0 = arith.constant 0 : index
    %c0_0 = arith.constant 0 : index
    %c0_1 = arith.constant 0 : index
    %c0_2 = arith.constant 0 : index
    %0 = vector.load %arg2[%c0, %c0_0, %c0_1, %c0_2] : memref<1x4x2x128xf32, #tpu.memory_space<vmem>>, vector<1x4x2x128xf32>
    %1 = vector.shape_cast %0 : vector<1x4x2x128xf32> to vector<4x2x128xf32>
    %c0_3 = arith.constant 0 : index
    %c0_4 = arith.constant 0 : index
    %c0_5 = arith.constant 0 : index
    %c0_6 = arith.constant 0 : index
    %2 = vector.load %arg3[%c0_3, %c0_4, %c0_5, %c0_6] : memref<1x1x2x128xi32, #tpu.memory_space<vmem>>, vector<1x1x2x128xi32>
    %3 = vector.shape_cast %2 : vector<1x1x2x128xi32> to vector<2x128xi32>
    %cst = arith.constant dense<0xFF800000> : vector<2x128xf32>
    %4 = vector.multi_reduction <maximumf>, %1, %cst [0] : vector<4x2x128xf32> to vector<2x128xf32>
    %5 = vector.shape_cast %4 : vector<2x128xf32> to vector<1x2x128xf32>
    %6 = vector.broadcast %5 : vector<1x2x128xf32> to vector<4x2x128xf32>
    %7 = arith.subf %1, %6 : vector<4x2x128xf32>
    %8 = math.exp %7 : vector<4x2x128xf32>
    %cst_7 = arith.constant dense<0.000000e+00> : vector<2x128xf32>
    %9 = vector.multi_reduction <add>, %8, %cst_7 [0] : vector<4x2x128xf32> to vector<2x128xf32>
    %10 = math.log %9 : vector<2x128xf32>
    %11 = arith.addf %4, %10 : vector<2x128xf32>
    %c-1_i32 = arith.constant -1 : i32
    %12 = vector.broadcast %c-1_i32 : i32 to vector<2x128xi32>
    %13 = arith.cmpi ne, %3, %12 : vector<2x128xi32>
    %14 = tpu.iota {dimensions = array<i32: 0>} : vector<4x2x128xi32>
    %15 = vector.shape_cast %3 : vector<2x128xi32> to vector<1x2x128xi32>
    %16 = vector.broadcast %15 : vector<1x2x128xi32> to vector<4x2x128xi32>
    %17 = arith.cmpi eq, %14, %16 : vector<4x2x128xi32>
    %18 = vector.shape_cast %13 : vector<2x128xi1> to vector<1x2x128xi1>
    %19 = vector.broadcast %18 : vector<1x2x128xi1> to vector<4x2x128xi1>
    %20 = arith.andi %17, %19 : vector<4x2x128xi1>
    %21 = vector.shape_cast %11 : vector<2x128xf32> to vector<1x2x128xf32>
    %22 = vector.broadcast %21 : vector<1x2x128xf32> to vector<4x2x128xf32>
    %23 = arith.subf %22, %1 : vector<4x2x128xf32>
    %cst_8 = arith.constant 0.000000e+00 : f32
    %24 = vector.broadcast %cst_8 : f32 to vector<4x2x128xf32>
    %25 = arith.select %20, %23, %24 : vector<4x2x128xi1>, vector<4x2x128xf32>
    %cst_9 = arith.constant dense<0.000000e+00> : vector<4x128xf32>
    %26 = vector.multi_reduction <add>, %25, %cst_9 [1] : vector<4x2x128xf32> to vector<4x128xf32>
    %27 = arith.extui %20 : vector<4x2x128xi1> to vector<4x2x128xi32>
    %28 = arith.sitofp %27 : vector<4x2x128xi32> to vector<4x2x128xf32>
    %cst_10 = arith.constant dense<0.000000e+00> : vector<4x128xf32>
    %29 = vector.multi_reduction <add>, %28, %cst_10 [1] : vector<4x2x128xf32> to vector<4x128xf32>
    %cst_11 = arith.constant dense<0.000000e+00> : vector<4xf32>
    %30 = vector.multi_reduction <add>, %26, %cst_11 [1] : vector<4x128xf32> to vector<4xf32>
    %31 = vector.shape_cast %30 : vector<4xf32> to vector<4x1xf32>
    %cst_12 = arith.constant dense<0.000000e+00> : vector<4xf32>
    %32 = vector.multi_reduction <add>, %29, %cst_12 [1] : vector<4x128xf32> to vector<4xf32>
    %33 = vector.shape_cast %32 : vector<4xf32> to vector<4x1xf32>
    %34 = tpu.concatenate %31, %33 in 1 : vector<4x1xf32>, vector<4x1xf32> -> vector<4x2xf32>
    %c0_13 = arith.constant 0 : index
    %c0_14 = arith.constant 0 : index
    %c0_15 = arith.constant 0 : index
    %c0_16 = arith.constant 0 : index
    %35 = vector.load %arg4[%c0_13, %c0_14, %c0_15, %c0_16] : memref<1x1x4x2xf32, #tpu.memory_space<vmem>>, vector<1x1x4x2xf32>
    %36 = vector.shape_cast %35 : vector<1x1x4x2xf32> to vector<4x2xf32>
    %37 = vector.shape_cast %34 : vector<4x2xf32> to vector<1x1x4x2xf32>
    tpu.vector_store %arg4[%c0_13, %c0_14, %c0_15, %c0_16], %37 {strides = array<i32>} : memref<1x1x4x2xf32, #tpu.memory_space<vmem>>, vector<1x1x4x2xf32>,
    return
  }
  func.func @transform_0(%arg0: i32, %arg1: i32) -> (i32, i32, i32, i32) {
    %c0_i32 = arith.constant 0 : i32
    %c0_i32_0 = arith.constant 0 : i32
    %c0_i32_1 = arith.constant 0 : i32
    return %arg0, %c0_i32, %arg1, %c0_i32_0 : i32, i32, i32, i32
  }
  func.func @transform_1(%arg0: i32, %arg1: i32) -> (i32, i32, i32, i32) {
    %c0_i32 = arith.constant 0 : i32
    %c0_i32_0 = arith.constant 0 : i32
    %c0_i32_1 = arith.constant 0 : i32
    return %arg0, %c0_i32, %arg1, %c0_i32_0 : i32, i32, i32, i32
  }
  func.func @transform_2(%arg0: i32, %arg1: i32) -> (i32, i32, i32, i32) {
    %c0_i32 = arith.constant 0 : i32
    %c0_i32_0 = arith.constant 0 : i32
    %c0_i32_1 = arith.constant 0 : i32
    return %arg0, %arg1, %c0_i32, %c0_i32_0 : i32, i32, i32, i32
  }
}

</mosaic_0001>

<llo_original>
// kernel: tpu_custom_call.1
$region0: #{tpu_custom_call.1}
  #allocation0 [shape = 'u32[]', space=smem, size = 0x4, offset = 0x4, fixed_abs, tag = 'smem constant byte address 0x4 - core index']
  #allocation1 [shape = 'u32[144,128]{1,0:T(1,128)}', space=vmem, size = 0x12000, scoped, tag = 'internal scratch']
  %s0 = inlined_call_operand.hbm [shape: f32[2,4,2,128], index: 0, kind: input, shape index: {}]
  %s1 = inlined_call_operand.hbm [shape: s32[2,1,2,128], index: 1, kind: input, shape index: {}]
  %s2 = inlined_call_operand.vmem [shape: f32[2,1,4,2], index: 2, kind: output, shape index: {}]
  %s3 = sld [smem:[#allocation0]]
  $region49: #{tpu_custom_call.1} parent=0
    _
  %s5 = ssub.s32 1, %s3
  %s6 = scalar_select 0, %s5, %s3
  $region1: #{tpu_custom_call.1} parent=0
    #allocation2 [shape = 'u8[8192]{0}', space=vmem, size = 0x2000, scoped, tag = 'input window, operand 0']
    #allocation3 [shape = 's32[2]{0}', space=sflag, size = 0x8, scoped, tag = 'scoped memory for tpu_custom_call.1']
    #allocation4 [shape = 'u8[2048]{0}', space=vmem, size = 0x800, scoped, tag = 'input window, operand 1']
    #allocation5 [shape = 's32[2]{0}', space=sflag, size = 0x8, scoped, tag = 'scoped memory for tpu_custom_call.1']
    %7 = vsyncpa [#allocation3], 0
    %s8 = scalar_lea.sflag [#allocation3], 1
    %9 = vsyncpa %s8, 0
    %10 = vsyncpa [#allocation5], 0
    %s11 = scalar_lea.sflag [#allocation5], 1
    %12 = vsyncpa %s11, 0
    loop: start=0, step=1, limit=4
    $region2: #{tpu_custom_call.1} parent=1 // loop_pre_header
      _
    $region3: #{tpu_custom_call.1} parent=1 // loop_header
      %s14 = sphi 0, %s18
      %p15 = scmp.ge.s32.totalorder %s14, 4
      %s21 = sphi 0, %s33
      %s22 = sphi 0, %s29
      %s23 = sphi 0, %s21
      %s24 = sphi 0, %s22
      %s25 = sphi 0, %s23
      %s26 = sphi 0, %s24
      %s38 = sphi 0, %s40
      %s41 = sphi 0, %s38
      %s42 = sphi 0, %s41
      %s58 = sphi 0, %s42
      %s66 = sphi 0, %s68
      %s69 = sphi 0, %s66
      %s70 = sphi 0, %s69
      %s86 = sphi 0, %s70
      %s94 = sphi 0, %s96
      %s97 = sphi 0, %s94
      %s98 = sphi 0, %s97
      %s114 = sphi 0, %s98
    $region4: #{tpu_custom_call.1} parent=1 // loop_header_branch
      %17 = sbr.rel (%p15) target = $region8
    $region5: #{tpu_custom_call.1} parent=1 // loop_body
      %s19 = ssub.s32 %s14, 1
      %s20 = ssub.s32 %s14, 2
      %s27 = sadd.s32 1, %s22
      %p28 = scmp.ge.s32.totalorder %s27, 1
      %s29 = scalar_select %p28, 0, %s27
      %s30 = sadd.s32 1, %s21
      %s31 = scalar_select %p28, %s30, %s21
      %p32 = scmp.ge.s32.totalorder %s31, 2
      %s33 = scalar_select %p32, 0, %s31
      %s34 = ssub.s32 %s21, %s33
      %s35 = ssub.s32 %s22, %s29
      %s36 = sor.u32 %s34, %s35
      %p37 = scmp.eq.s32.totalorder %s36, 0
      %s39 = sadd.s32 %s38, 1
      %s40 = scalar_select %p37, %s38, %s39
      %p43 = pneg %p37
      %p44 = scmp.eq.s32.totalorder %s14, 1
      %p45 = por %p43, %p44
      %p46 = scmp.ne.s32.totalorder %s38, %s41
      %p47 = scmp.eq.s32.totalorder %s14, 0
      %p48 = por %p46, %p47
      %p49 = scmp.ne.s32.totalorder %s38, %s41
      %p50 = scmp.eq.s32.totalorder %s19, 1
      %p51 = por %p49, %p50
      %p52 = scmp.ne.s32.totalorder %s41, %s42
      %p53 = scmp.eq.s32.totalorder %s19, 0
      %p54 = por %p52, %p53
      %p55 = scmp.ne.s32.totalorder %s41, %s42
      %p56 = scmp.eq.s32.totalorder %s20, 1
      %p57 = por %p55, %p56
      %p59 = scmp.ne.s32.totalorder %s42, %s58
      %p60 = scmp.eq.s32.totalorder %s20, 0
      %p61 = por %p59, %p60
      %s62 = ssub.s32 %s21, %s33
      %s63 = ssub.s32 %s22, %s29
      %s64 = sor.u32 %s62, %s63
      %p65 = scmp.eq.s32.totalorder %s64, 0
      %s67 = sadd.s32 %s66, 1
      %s68 = scalar_select %p65, %s66, %s67
      %p71 = pneg %p65
      %p72 = scmp.eq.s32.totalorder %s14, 1
      %p73 = por %p71, %p72
      %p74 = scmp.ne.s32.totalorder %s66, %s69
      %p75 = scmp.eq.s32.totalorder %s14, 0
      %p76 = por %p74, %p75
      %p77 = scmp.ne.s32.totalorder %s66, %s69
      %p78 = scmp.eq.s32.totalorder %s19, 1
      %p79 = por %p77, %p78
      %p80 = scmp.ne.s32.totalorder %s69, %s70
      %p81 = scmp.eq.s32.totalorder %s19, 0
      %p82 = por %p80, %p81
      %p83 = scmp.ne.s32.totalorder %s69, %s70
      %p84 = scmp.eq.s32.totalorder %s20, 1
      %p85 = por %p83, %p84
      %p87 = scmp.ne.s32.totalorder %s70, %s86
      %p88 = scmp.eq.s32.totalorder %s20, 0
      %p89 = por %p87, %p88
      %s90 = ssub.s32 %s21, %s33
      %s91 = ssub.s32 %s22, %s29
      %s92 = sor.u32 %s90, %s91
      %p93 = scmp.eq.s32.totalorder %s92, 0
      %s95 = sadd.s32 %s94, 1
      %s96 = scalar_select %p93, %s94, %s95
      %p99 = pneg %p93
      %p100 = scmp.eq.s32.totalorder %s14, 1
      %p101 = por %p99, %p100
      %p102 = scmp.ne.s32.totalorder %s94, %s97
      %p103 = scmp.eq.s32.totalorder %s14, 0
      %p104 = por %p102, %p103
      %p105 = scmp.ne.s32.totalorder %s94, %s97
      %p106 = scmp.eq.s32.totalorder %s19, 1
      %p107 = por %p105, %p106
      %p108 = scmp.ne.s32.totalorder %s97, %s98
      %p109 = scmp.eq.s32.totalorder %s19, 0
      %p110 = por %p108, %p109
      %p111 = scmp.ne.s32.totalorder %s97, %s98
      %p112 = scmp.eq.s32.totalorder %s20, 1
      %p113 = por %p111, %p112
      %p115 = scmp.ne.s32.totalorder %s98, %s114
      %p116 = scmp.eq.s32.totalorder %s20, 0
      %p117 = por %p115, %p116
      %p118 = scmp.le.s32.totalorder 1, %s14
      %p119 = scmp.lt.s32.totalorder %s14, 3
      %p120 = pnand %p118, %p119
      %p121 = pneg %p120
      // Predicated region
      $region9: #{tpu_custom_call.1} parent=5 // pred_check
        _
      $region10: #{tpu_custom_call.1} parent=5 // pred_check_branch
        %123 = sbr.rel (%p120) target = $region12
      $region11: #{tpu_custom_call.1} parent=5 // pred_region
        %s124 = ssub.s32 %s14, 1
      $region12: #{tpu_custom_call.1} parent=5 // pred_fallthru
        _
      %p125 = scmp.lt.s32.totalorder %s14, 2
      // Predicated region
      $region13: #{tpu_custom_call.1} parent=5 // pred_check
        %p126 = pneg %p125
      $region14: #{tpu_custom_call.1} parent=5 // pred_check_branch
        %128 = sbr.rel (%p126) target = $region16
      $region15: #{tpu_custom_call.1} parent=5 // pred_region
        // Predicated region
        $region17: #{tpu_custom_call.1} parent=15 // pred_check
          %p129 = pneg %p48
        $region18: #{tpu_custom_call.1} parent=15 // pred_check_branch
          %131 = sbr.rel (%p129) target = $region20
        $region19: #{tpu_custom_call.1} parent=15 // pred_region
          %s132 = sand.u32 %s38, 1
          %s133 = scalar_lea.sflag [#allocation3], %s132
          %s134 = sand.u32 %s38, 1
          %s135 = smul.addr %s134, 8
          %s136 = scalar_lea.vmem [#allocation2], %s135
          %s138 = ssub.s32 128, 128
          %139 = vsyncadd %s133, %s138
          %s140 = smul.addr %s21, 4
          %s141 = sadd.s32 %s22, %s140
          %s142 = smul.addr %s141, 32
          %s143 = scalar_lea.hbm %s0, %s142
          %s144 = sshll.u32 %s136, 4
          %s145 = int_to_ptr.vmem [resolvable:$true] %s144
          %150 = dma.hbm_to_vmem [thread:$0]  %s143, 128, %s145, %s133, 32, 32, 2
        $region20: #{tpu_custom_call.1} parent=15 // pred_fallthru
          _
        // Predicated region
        $region21: #{tpu_custom_call.1} parent=15 // pred_check
          %p151 = pneg %p76
        $region22: #{tpu_custom_call.1} parent=15 // pred_check_branch
          %153 = sbr.rel (%p151) target = $region24
        $region23: #{tpu_custom_call.1} parent=15 // pred_region
          %s154 = sand.u32 %s66, 1
          %s155 = scalar_lea.sflag [#allocation5], %s154
          %s156 = sand.u32 %s66, 1
          %s157 = smul.addr %s156, 2
          %s158 = scalar_lea.vmem [#allocation4], %s157
          %s160 = ssub.s32 32, 32
          %161 = vsyncadd %s155, %s160
          %s162 = sadd.s32 %s22, %s21
          %s163 = smul.addr %s162, 32
          %s164 = scalar_lea.hbm %s1, %s163
          %s166 = sshll.u32 %s158, 4
          %s167 = int_to_ptr.vmem [resolvable:$true] %s166
          %169 = dma.hbm_to_vmem [thread:$0]  %s164, 32, %s167, %s155
        $region24: #{tpu_custom_call.1} parent=15 // pred_fallthru
          _
      $region16: #{tpu_custom_call.1} parent=5 // pred_fallthru
        _
      %p170 = scmp.le.s32.totalorder 1, %s14
      %p171 = scmp.lt.s32.totalorder %s14, 3
      %p172 = pnand %p170, %p171
      %p173 = pneg %p172
      // Predicated region
      $region25: #{tpu_custom_call.1} parent=5 // pred_check
        _
      $region26: #{tpu_custom_call.1} parent=5 // pred_check_branch
        %175 = sbr.rel (%p172) target = $region28
      $region27: #{tpu_custom_call.1} parent=5 // pred_region
        %s176 = ssub.s32 %s14, 1
        %s177 = sand.u32 %s41, 1
        %s178 = scalar_lea.sflag [#allocation3], %s177
        %s179 = sand.u32 %s41, 1
        %s180 = smul.addr %s179, 8
        %s181 = scalar_lea.vmem [#allocation2], %s180
        // Predicated region
        $region29: #{tpu_custom_call.1} parent=27 // pred_check
          %p182 = pneg %p54
        $region30: #{tpu_custom_call.1} parent=27 // pred_check_branch
          %184 = sbr.rel (%p182) target = $region32
        $region31: #{tpu_custom_call.1} parent=27 // pred_region
          %185 = dma.done %s178, 128
        $region32: #{tpu_custom_call.1} parent=27 // pred_fallthru
          _
        %s186 = sand.u32 %s69, 1
        %s187 = scalar_lea.sflag [#allocation5], %s186
        %s188 = sand.u32 %s69, 1
        %s189 = smul.addr %s188, 2
        %s190 = scalar_lea.vmem [#allocation4], %s189
        // Predicated region
        $region33: #{tpu_custom_call.1} parent=27 // pred_check
          %p191 = pneg %p82
        $region34: #{tpu_custom_call.1} parent=27 // pred_check_branch
          %193 = sbr.rel (%p191) target = $region36
        $region35: #{tpu_custom_call.1} parent=27 // pred_region
          %194 = dma.done %s187, 32
        $region36: #{tpu_custom_call.1} parent=27 // pred_fallthru
          _
        %s195 = sand.u32 %s41, 1
        %s196 = scalar_lea.sflag [#allocation3], %s195
        %s197 = sand.u32 %s41, 1
        %s198 = smul.addr %s197, 8
        %s199 = scalar_lea.vmem [#allocation2], %s198
        %p200 = pneg %p54
        %p201 = pneg %p51
        %s202 = sand.u32 %s69, 1
        %s203 = scalar_lea.sflag [#allocation5], %s202
        %s204 = sand.u32 %s69, 1
        %s205 = smul.addr %s204, 2
        %s206 = scalar_lea.vmem [#allocation4], %s205
        %p207 = pneg %p82
        %p208 = pneg %p79
        %p209 = pneg %p110
        %p210 = pneg %p107
        %p211 = scmp.lt.s32.totalorder %s23, 1
        %s212 = scalar_select %p211, %s23, 1
        %p213 = scmp.lt.s32.totalorder %s24, 0
        %s214 = scalar_select %p213, %s24, 0
        %s215 = sadd.s32 %s214, %s212
        %s216 = smul.addr %s215, 4
        %s217 = scalar_lea.vmem %s2, %s216
        %p218 = scmp.lt.s32.totalorder %s23, 1
        %s219 = scalar_select %p218, %s23, 1
        %p220 = scmp.lt.s32.totalorder %s24, 0
        %s221 = scalar_select %p220, %s24, 0
        %s222 = sadd.s32 %s221, %s219
        %s223 = smul.addr %s222, 4
        %s224 = scalar_lea.vmem %s2, %s223
        %v225 = vld [vmem:[%s181] sm:$0x3]
        %v226 = vld [vmem:[%s181 + $0x2] sm:$0x3]
        %v227 = vld [vmem:[%s181 + $0x4] sm:$0x3]
        %v228 = vld [vmem:[%s181 + $0x6] sm:$0x3]
        %v229 = vld [vmem:[%s190] sm:$0x3]
        %vm230 = vcmask 1041408
        %v231 = vsel %vm230, %v225, -inf
        %v232 = vsel %vm230, %v226, -inf
        %v233 = vsel %vm230, %v227, -inf
        %v234 = vsel %vm230, %v228, -inf
        %v235 = vmax.f32 %v231, %v232
        %v236 = vmax.f32 %v233, %v234
        %v237 = vmax.f32 %v235, %v236
        %v238 = vsub.f32 %v225, %v237
        %v239 = vsub.f32 %v226, %v237
        %v240 = vsub.f32 %v227, %v237
        %v241 = vsub.f32 %v228, %v237
        %v242 = vmul.f32 %v238, 1.442695
        %v243 = vpow.pop %v242
        %v244 = vmul.f32 %v239, 1.442695
        %v245 = vpow.pop %v244
        %v246 = vmul.f32 %v240, 1.442695
        %v247 = vpow.pop %v246
        %v248 = vmul.f32 %v241, 1.442695
        %v249 = vpow.pop %v248
        %v250 = vsel %vm230, %v243, 0.0
        %v251 = vsel %vm230, %v245, 0.0
        %v252 = vadd.f32 %v250, %v251
        %v253 = vsel %vm230, %v247, 0.0
        %v254 = vadd.f32 %v252, %v253
        %v255 = vsel %vm230, %v249, 0.0
        %v256 = vadd.f32 %v254, %v255
        %v257 = vlog2.pop %v256
        %v258 = vmul.f32 %v257, 0.6931472
        %v259 = vadd.f32 %v237, %v258
        %vm260 = vcmp.ne.s32.totalorder %v229, 4294967295
        %vm261 = vcmp.eq.s32.totalorder %v229, 0
        %vm262 = vcmp.eq.s32.totalorder %v229, 1
        %vm263 = vcmp.eq.s32.totalorder %v229, 2
        %vm264 = vcmp.eq.s32.totalorder %v229, 3
        %v265 = vsel %vm260, 1, 0
        %vm266 = vcmp.eq.s32.totalorder %v265, 1
        %vm267 = vmand %vm261, %vm266
        %vm268 = vmand %vm262, %vm266
        %vm269 = vmand %vm263, %vm266
        %vm270 = vmand %vm264, %vm266
        %v271 = vsub.f32 %v259, %v225
        %v272 = vsub.f32 %v259, %v226
        %v273 = vsub.f32 %v259, %v227
        %v274 = vsub.f32 %v259, %v228
        %v275 = vsel %vm267, %v271, 0.0
        %v276 = vsel %vm268, %v272, 0.0
        %v277 = vsel %vm269, %v273, 0.0
        %v278 = vsel %vm270, %v274, 0.0
        %v279 = vsel %vm230, %v275, 0.0
        %v280 = vrot.slane %v279, 4
        %v281 = vadd.f32 %v279, %v280
        %v282 = vrot.slane %v281, 2
        %v283 = vadd.f32 %v281, %v282
        %v284 = vrot.slane %v283, 1
        %v285 = vadd.f32 %v283, %v284
        %v286 = vsel %vm230, %v276, 0.0
        %v287 = vrot.slane %v286, 4
        %v288 = vadd.f32 %v286, %v287
        %v289 = vrot.slane %v288, 2
        %v290 = vadd.f32 %v288, %v289
        %v291 = vrot.slane %v290, 1
        %v292 = vadd.f32 %v290, %v291
        %v293 = vsel %vm230, %v277, 0.0
        %v294 = vrot.slane %v293, 4
        %v295 = vadd.f32 %v293, %v294
        %v296 = vrot.slane %v295, 2
        %v297 = vadd.f32 %v295, %v296
        %v298 = vrot.slane %v297, 1
        %v299 = vadd.f32 %v297, %v298
        %v300 = vsel %vm230, %v278, 0.0
        %v301 = vrot.slane %v300, 4
        %v302 = vadd.f32 %v300, %v301
        %v303 = vrot.slane %v302, 2
        %v304 = vadd.f32 %v302, %v303
        %v305 = vrot.slane %v304, 1
        %v306 = vadd.f32 %v304, %v305
        %v307 = vsel %vm267, 1, 0
        %v308 = vsel %vm268, 1, 0
        %v309 = vsel %vm269, 1, 0
        %v310 = vsel %vm270, 1, 0
        %v311 = vcvt.s32.f32 %v307
        %v312 = vcvt.s32.f32 %v308
        %v313 = vcvt.s32.f32 %v309
        %v314 = vcvt.s32.f32 %v310
        %v315 = vsel %vm230, %v311, 0.0
        %v316 = vrot.slane %v315, 4
        %v317 = vadd.f32 %v315, %v316
        %v318 = vrot.slane %v317, 2
        %v319 = vadd.f32 %v317, %v318
        %v320 = vrot.slane %v319, 1
        %v321 = vadd.f32 %v319, %v320
        %v322 = vsel %vm230, %v312, 0.0
        %v323 = vrot.slane %v322, 4
        %v324 = vadd.f32 %v322, %v323
        %v325 = vrot.slane %v324, 2
        %v326 = vadd.f32 %v324, %v325
        %v327 = vrot.slane %v326, 1
        %v328 = vadd.f32 %v326, %v327
        %v329 = vsel %vm230, %v313, 0.0
        %v330 = vrot.slane %v329, 4
        %v331 = vadd.f32 %v329, %v330
        %v332 = vrot.slane %v331, 2
        %v333 = vadd.f32 %v331, %v332
        %v334 = vrot.slane %v333, 1
        %v335 = vadd.f32 %v333, %v334
        %v336 = vsel %vm230, %v314, 0.0
        %v337 = vrot.slane %v336, 4
        %v338 = vadd.f32 %v336, %v337
        %v339 = vrot.slane %v338, 2
        %v340 = vadd.f32 %v338, %v339
        %v341 = vrot.slane %v340, 1
        %v342 = vadd.f32 %v340, %v341
        %vm347 = vcmask 1041409
        %v348 = vsel %vm347, %v292, %v285
        %vm349 = vcmask 1042434
        %v350 = vsel %vm349, %v299, %v348
        %vm351 = vcmask 1043459
        %v352 = vsel %vm351, %v306, %v350
        %vm354 = vcmask 1043456
        %v355 = vsel %vm354, %v352, 0.0
        %356 = vadd.xlane.f32.xlu0 %v355
        %v357 = vpop.xlane.xlu0 %356
        %v362 = vsel %vm347, %v328, %v321
        %v363 = vsel %vm349, %v335, %v362
        %v364 = vsel %vm351, %v342, %v363
        %v366 = vsel %vm354, %v364, 0.0
        %367 = vadd.xlane.f32.xlu0 %v366
        %v368 = vpop.xlane.xlu0 %367
        %vm369 = vcmask 7168
        %v370 = vsel %vm369, %v357, %v368
        %vm371 = vcmask 11264
        %372 = vst.msk [vmem:[%s224] sm:$0xf] %vm371, %v370
        %p373 = scmp.lt.s32.totalorder %s23, 1
        %s374 = scalar_select %p373, %s23, 1
        %p375 = scmp.lt.s32.totalorder %s24, 0
        %s376 = scalar_select %p375, %s24, 0
        %s377 = sadd.s32 %s376, %s374
        %s378 = smul.addr %s377, 4
        %s379 = scalar_lea.vmem %s2, %s378
        // Predicated region
        $region37: #{tpu_custom_call.1} parent=27 // pred_check
          %p380 = pneg %p107
        $region38: #{tpu_custom_call.1} parent=27 // pred_check_branch
          %382 = sbr.rel (%p380) target = $region40
        $region39: #{tpu_custom_call.1} parent=27 // pred_region
          _
        $region40: #{tpu_custom_call.1} parent=27 // pred_fallthru
          _
      $region28: #{tpu_custom_call.1} parent=5 // pred_fallthru
        _
      %p383 = scmp.le.s32.totalorder 2, %s14
      // Predicated region
      $region41: #{tpu_custom_call.1} parent=5 // pred_check
        %p384 = pneg %p383
      $region42: #{tpu_custom_call.1} parent=5 // pred_check_branch
        %386 = sbr.rel (%p384) target = $region44
      $region43: #{tpu_custom_call.1} parent=5 // pred_region
        %s387 = ssub.s32 %s14, 2
        // Predicated region
        $region45: #{tpu_custom_call.1} parent=43 // pred_check
          %p388 = pneg %p113
        $region46: #{tpu_custom_call.1} parent=43 // pred_check_branch
          %390 = sbr.rel (%p388) target = $region48
        $region47: #{tpu_custom_call.1} parent=43 // pred_region
          %p391 = scmp.lt.s32.totalorder %s25, 1
          %s392 = scalar_select %p391, %s25, 1
          %p393 = scmp.lt.s32.totalorder %s26, 0
          %s394 = scalar_select %p393, %s26, 0
          %s395 = sadd.s32 %s394, %s392
          %s396 = smul.addr %s395, 4
          %s397 = scalar_lea.vmem %s2, %s396
        $region48: #{tpu_custom_call.1} parent=43 // pred_fallthru
          _
      $region44: #{tpu_custom_call.1} parent=5 // pred_fallthru
        _
    $region6: #{tpu_custom_call.1} parent=1 // loop_footer
      %s18 = sadd.s32 1, %s14
    $region7: #{tpu_custom_call.1} parent=1 // loop_footer_branch
      %13 = sbr.rel target = $region3
    $region8: #{tpu_custom_call.1} parent=1 // loop_exit
      _
    %398 = vsyncpa [#allocation3], 1
    %s399 = scalar_lea.sflag [#allocation3], 1
    %400 = vsyncpa %s399, 1
    %401 = vsyncpa [#allocation5], 1
    %s402 = scalar_lea.sflag [#allocation5], 1
    %403 = vsyncpa %s402, 1

</llo_original>
